<compile_context>
chip_gen: v7x
topology: tpu7x:2x2x1
jax: 0.10.0
libtpu: 0.0.40
codegen_flags: <defaults>
</compile_context>

<pallas_src>
import functools

import jax
import jax.numpy as jnp
from jax.experimental import pallas as pl
from jax.experimental.pallas import tpu as pltpu


def _round_up(n, m):
    return ((n + m - 1) // m) * m


# ----------------------------------------------------------------------------
# Kernel body: matmul -> +bias -> LeakyReLU(0.1) -> matmul -> +bias -> store.
# ----------------------------------------------------------------------------
def _generator_kernel(x_ref, wa_ref, ba_ref, wb_ref, bb_ref, o_ref):
    # Cast the f32 input tile to the compute dtype *inside VMEM* (free vs. an
    # extra HBM pass in the wrapper).
    x = x_ref[...].astype(wa_ref.dtype)
    # Fused Linear(input, hidden) -- algebraic collapse of layers 1-4.
    h = jnp.dot(x, wa_ref[...], preferred_element_type=jnp.float32) + ba_ref[...]
    # LeakyReLU(0.1) in f32 on the accumulator (VPU): mul + max.
    h = jnp.maximum(h, 0.1 * h)
    # Final Linear(hidden, output).
    out = jnp.dot(h.astype(wb_ref.dtype), wb_ref[...],
                  preferred_element_type=jnp.float32) + bb_ref[...]
    o_ref[...] = out.astype(o_ref.dtype)


# ----------------------------------------------------------------------------
# One-time parameter preprocessing (call once, outside the hot loop).
# ----------------------------------------------------------------------------
def preprocess_generator_params(params, *, compute_dtype=jnp.float32):
    """Fuse layers 1-4, pad feature dims to 128 lanes, cast weights.

    params: list of 5 (W[in,out], b[1,out]) f32 arrays.
    Returns a dict of device arrays plus static ints for the forward pass.
    """
    (w1, b1), (w2, b2), (w3, b3), (w4, b4), (w5, b5) = params
    in_dim = w1.shape[0]
    hidden = w4.shape[1]
    out_dim = w5.shape[1]

    hp = jax.lax.Precision.HIGHEST
    wa = jnp.dot(jnp.dot(jnp.dot(w1, w2, precision=hp), w3, precision=hp),
                 w4, precision=hp)                                    # [in, hidden]
    ba = jnp.dot(
        jnp.dot(jnp.dot(b1, w2, precision=hp) + b2, w3, precision=hp) + b3,
        w4, precision=hp) + b4                                        # [1, hidden]

    hidden_pad = _round_up(hidden, 128)
    out_pad = _round_up(out_dim, 128)

    wa_p = jnp.pad(wa, ((0, 0), (0, hidden_pad - hidden))).astype(compute_dtype)
    ba_p = jnp.pad(ba, ((0, 0), (0, hidden_pad - hidden)))            # f32 bias
    wb_p = jnp.pad(w5, ((0, hidden_pad - hidden),
                        (0, out_pad - out_dim))).astype(compute_dtype)
    bb_p = jnp.pad(b5, ((0, 0), (0, out_pad - out_dim)))              # f32 bias

    return {
        "wa": wa_p, "ba": ba_p, "wb": wb_p, "bb": bb_p,
        "in_dim": in_dim, "hidden_pad": hidden_pad,
        "out_dim": out_dim, "out_pad": out_pad,
    }


# ----------------------------------------------------------------------------
# Tile selection / VMEM budgeting.
# ----------------------------------------------------------------------------
_VMEM_TILE_BUDGET = 20 * 1024 * 1024   # keep pipelined buffers well inside
                                       # v7x's 32 MiB scoped / v5e's 16 MiB
                                       # (raised via vmem_limit_bytes).


def _pipelined_vmem_bytes(tb, in_dim, hidden_pad, out_pad, w_itemsize,
                          out_itemsize):
    x_b = 2 * tb * in_dim * 4                   # double-buffered x tiles (f32)
    o_b = 2 * tb * out_pad * out_itemsize       # double-buffered out tiles
    h_b = 2 * tb * hidden_pad * 4               # f32 intermediates / acc slack
    w_b = 2 * (in_dim * hidden_pad + hidden_pad * out_pad) * w_itemsize
    b_b = 2 * (hidden_pad + out_pad) * 4
    return x_b + o_b + h_b + w_b + b_b


def _choose_batch_tile(batch, block_batch, in_dim, hidden_pad, out_pad,
                       w_itemsize, out_itemsize, target_steps=4):
    block_batch = max(8, (block_batch // 8) * 8)
    # Aim for >= target_steps grid steps (v7x megacore + pipeline), capped at
    # block_batch rows per tile.
    tb = min(block_batch, _round_up(pl.cdiv(batch, target_steps), 8))
    tb = max(tb, 8)
    # Cap so pipelined buffers stay under the VMEM budget.
    while tb > 8 and _pipelined_vmem_bytes(
            tb, in_dim, hidden_pad, out_pad, w_itemsize, out_itemsize) \
            > _VMEM_TILE_BUDGET:
        tb = max(8, _round_up(tb // 2, 8))
    return tb


# ----------------------------------------------------------------------------
# Forward pass.
# ----------------------------------------------------------------------------
def generator_forward(x, gp, *, block_batch=2048, out_dtype=jnp.float32):
    """x: [batch, input_size] f32; gp: output of preprocess_generator_params.

    Returns [batch, output_size] in out_dtype, numerically matching the
    sequential Linear x4 -> LeakyReLU(0.1) -> Linear forward pass.
    """
    batch, in_dim = x.shape
    assert in_dim == gp["in_dim"], "input feature dim mismatch"
    hidden_pad = gp["hidden_pad"]
    out_dim = gp["out_dim"]
    out_pad = gp["out_pad"]

    w_itemsize = jnp.dtype(gp["wa"].dtype).itemsize
    out_itemsize = jnp.dtype(out_dtype).itemsize

    tb = _choose_batch_tile(batch, block_batch, in_dim, hidden_pad, out_pad,
                            w_itemsize, out_itemsize)
    grid = (pl.cdiv(batch, tb),)

    est_vmem = _pipelined_vmem_bytes(tb, in_dim, hidden_pad, out_pad,
                                     w_itemsize, out_itemsize)
    vmem_limit = int(min(max(est_vmem + (8 << 20), 16 << 20), 48 << 20))

    flops = 2 * batch * (in_dim * hidden_pad + hidden_pad * out_pad)
    bytes_accessed = (batch * in_dim * 4                          # x in (f32)
                      + (in_dim * hidden_pad
                         + hidden_pad * out_pad) * w_itemsize     # weights
                      + (hidden_pad + out_pad) * 4                # biases
                      + batch * out_pad * out_itemsize)           # output

    out = pl.pallas_call(
        _generator_kernel,
        out_shape=jax.ShapeDtypeStruct((batch, out_pad), out_dtype),
        grid=grid,
        in_specs=[
            pl.BlockSpec((tb, in_dim), lambda i: (i, 0)),           # x tile
            pl.BlockSpec((in_dim, hidden_pad), lambda i: (0, 0)),   # fused W (resident)
            pl.BlockSpec((1, hidden_pad), lambda i: (0, 0)),        # fused b (resident)
            pl.BlockSpec((hidden_pad, out_pad), lambda i: (0, 0)),  # W5 (resident)
            pl.BlockSpec((1, out_pad), lambda i: (0, 0)),           # b5 (resident)
        ],
        out_specs=pl.BlockSpec((tb, out_pad), lambda i: (i, 0)),
        compiler_params=pltpu.CompilerParams(
            dimension_semantics=("parallel",),
            vmem_limit_bytes=vmem_limit),
        cost_estimate=pl.CostEstimate(
            flops=int(flops), transcendentals=0,
            bytes_accessed=int(bytes_accessed)),
    )(x, gp["wa"], gp["ba"], gp["wb"], gp["bb"])

    # Only the lane de-pad remains (skipped when out_dim is 128-aligned).
    if out_dim != out_pad:
        out = out[:, :out_dim]
    return out


# ----------------------------------------------------------------------------
# Init + pure-JAX reference (unfused) for validation.
# ----------------------------------------------------------------------------
def init_generator_params(key, input_size, hidden_size, output_size):
    """PyTorch nn.Linear default init: U(-1/sqrt(fan_in), 1/sqrt(fan_in)).
    Weights stored transposed as [in, out]; biases as [1, out]."""
    dims = [(input_size, 64),
            (64, hidden_size),
            (hidden_size, 256),
            (256, hidden_size),
            (hidden_size, output_size)]
    params = []
    for (fan_in, fan_out) in dims:
        key, kw, kb = jax.random.split(key, 3)
        bound = 1.0 / jnp.sqrt(float(fan_in))
        w = jax.random.uniform(kw, (fan_in, fan_out), jnp.float32, -bound, bound)
        b = jax.random.uniform(kb, (1, fan_out), jnp.float32, -bound, bound)
        params.append((w, b))
    return params


def generator_ref(x, params):
    """Sequential Linear x4 -> LeakyReLU(0.1) -> Linear (matches the module)."""
    h = x
    for i, (w, b) in enumerate(params):
        h = jnp.dot(h, w, precision=jax.lax.Precision.HIGHEST) + b
        if i == 3:
            h = jnp.where(h > 0, h, 0.1 * h)
    return h


if __name__ == "__main__":
    input_size, hidden_size, output_size = 16, 32, 16

    key = jax.random.PRNGKey(0)
    key, kx1, kx2 = jax.random.split(key, 3)
    params = init_generator_params(key, input_size, hidden_size, output_size)

    # One-time parameter preprocessing (hoisted out of the hot path).
    gp_f32 = preprocess_generator_params(params)
    gp_bf16 = preprocess_generator_params(params, compute_dtype=jnp.bfloat16)

    # Small batch (single grid step) and a ragged multi-step batch.
    x_small = jax.random.normal(kx1, (8, input_size), jnp.float32)
    x_big = jax.random.normal(kx2, (300, input_size), jnp.float32)

    for x in (x_small, x_big):
        ref = generator_ref(x, params)

        out = jax.block_until_ready(generator_forward(x, gp_f32))
        assert out.shape == (x.shape[0], output_size)
        assert jnp.allclose(out, ref, atol=1e-4, rtol=1e-4), "f32 path mismatch"

        out_bf16 = jax.block_until_ready(generator_forward(x, gp_bf16))
        assert out_bf16.shape == (x.shape[0], output_size)
        assert jnp.allclose(out_bf16, ref, atol=1e-1, rtol=1e-1), "bf16 path mismatch"

    print("KERNEL_OK")
</pallas_src>

<mosaic_0001>
module attributes {stable_mosaic.version = 11 : i64} {
  func.func @_generator_kernel(%arg0: i32, %arg1: memref<8x16xf32, #tpu.memory_space<vmem>>, %arg2: memref<16x128xf32, #tpu.memory_space<vmem>>, %arg3: memref<1x128xf32, #tpu.memory_space<vmem>>, %arg4: memref<128x128xf32, #tpu.memory_space<vmem>>, %arg5: memref<1x128xf32, #tpu.memory_space<vmem>>, %arg6: memref<8x128xf32, #tpu.memory_space<vmem>>) attributes {dimension_semantics = [#tpu.dimension_semantics<parallel>], iteration_bounds = array<i64: 1>, scalar_prefetch = 0 : i64, scratch_operands = 0 : i64, tpu.core_type = #tpu.core_type<tc>, window_params = [{transform_indices = @transform_0, window_bounds = array<i64: 8, 16>}, {pipeline_mode = #tpu.pipeline_mode<synchronous>, transform_indices = @transform_1, window_bounds = array<i64: 16, 128>}, {pipeline_mode = #tpu.pipeline_mode<synchronous>, transform_indices = @transform_2, window_bounds = array<i64: 1, 128>}, {pipeline_mode = #tpu.pipeline_mode<synchronous>, transform_indices = @transform_3, window_bounds = array<i64: 128, 128>}, {pipeline_mode = #tpu.pipeline_mode<synchronous>, transform_indices = @transform_4, window_bounds = array<i64: 1, 128>}, {transform_indices = @transform_5, window_bounds = array<i64: 8, 128>}]} {
    %c0 = arith.constant 0 : index
    %c0_0 = arith.constant 0 : index
    %0 = vector.load %arg1[%c0, %c0_0] : memref<8x16xf32, #tpu.memory_space<vmem>>, vector<8x16xf32>
    %c0_1 = arith.constant 0 : index
    %c0_2 = arith.constant 0 : index
    %1 = vector.load %arg2[%c0_1, %c0_2] : memref<16x128xf32, #tpu.memory_space<vmem>>, vector<16x128xf32>
    %cst = arith.constant dense<0.000000e+00> : vector<8x128xf32>
    %2 = tpu.matmul %0, %1, %cst {dimension_numbers = #tpu.dot_dimension_numbers<[1], [0], [0], [1], [0, 0, 1, 1], [], []>} : vector<8x16xf32>, vector<16x128xf32>, vector<8x128xf32> -> vector<8x128xf32>
    %c0_3 = arith.constant 0 : index
    %c0_4 = arith.constant 0 : index
    %3 = vector.load %arg3[%c0_3, %c0_4] : memref<1x128xf32, #tpu.memory_space<vmem>>, vector<1x128xf32>
    %4 = vector.broadcast %3 : vector<1x128xf32> to vector<8x128xf32>
    %5 = arith.addf %2, %4 : vector<8x128xf32>
    %cst_5 = arith.constant 1.000000e-01 : f32
    %6 = vector.broadcast %cst_5 : f32 to vector<8x128xf32>
    %7 = arith.mulf %6, %5 : vector<8x128xf32>
    %8 = arith.maximumf %5, %7 : vector<8x128xf32>
    %c0_6 = arith.constant 0 : index
    %c0_7 = arith.constant 0 : index
    %9 = vector.load %arg4[%c0_6, %c0_7] : memref<128x128xf32, #tpu.memory_space<vmem>>, vector<128x128xf32>
    %cst_8 = arith.constant dense<0.000000e+00> : vector<8x128xf32>
    %10 = tpu.matmul %8, %9, %cst_8 {dimension_numbers = #tpu.dot_dimension_numbers<[1], [0], [0], [1], [0, 0, 1, 1], [], []>} : vector<8x128xf32>, vector<128x128xf32>, vector<8x128xf32> -> vector<8x128xf32>
    %c0_9 = arith.constant 0 : index
    %c0_10 = arith.constant 0 : index
    %11 = vector.load %arg5[%c0_9, %c0_10] : memref<1x128xf32, #tpu.memory_space<vmem>>, vector<1x128xf32>
    %12 = vector.broadcast %11 : vector<1x128xf32> to vector<8x128xf32>
    %13 = arith.addf %10, %12 : vector<8x128xf32>
    %c0_11 = arith.constant 0 : index
    %c0_12 = arith.constant 0 : index
    %14 = vector.load %arg6[%c0_11, %c0_12] : memref<8x128xf32, #tpu.memory_space<vmem>>, vector<8x128xf32>
    tpu.vector_store %arg6[%c0_11, %c0_12], %13 {strides = array<i32>} : memref<8x128xf32, #tpu.memory_space<vmem>>, vector<8x128xf32>,
    return
  }
  func.func @transform_0(%arg0: i32) -> (i32, i32) {
    %c0_i32 = arith.constant 0 : i32
    %c0_i32_0 = arith.constant 0 : i32
    return %arg0, %c0_i32 : i32, i32
  }
  func.func @transform_1(%arg0: i32) -> (i32, i32) {
    %c0_i32 = arith.constant 0 : i32
    %c0_i32_0 = arith.constant 0 : i32
    %c0_i32_1 = arith.constant 0 : i32
    return %c0_i32, %c0_i32_0 : i32, i32
  }
  func.func @transform_2(%arg0: i32) -> (i32, i32) {
    %c0_i32 = arith.constant 0 : i32
    %c0_i32_0 = arith.constant 0 : i32
    %c0_i32_1 = arith.constant 0 : i32
    return %c0_i32, %c0_i32_0 : i32, i32
  }
  func.func @transform_3(%arg0: i32) -> (i32, i32) {
    %c0_i32 = arith.constant 0 : i32
    %c0_i32_0 = arith.constant 0 : i32
    %c0_i32_1 = arith.constant 0 : i32
    return %c0_i32, %c0_i32_0 : i32, i32
  }
  func.func @transform_4(%arg0: i32) -> (i32, i32) {
    %c0_i32 = arith.constant 0 : i32
    %c0_i32_0 = arith.constant 0 : i32
    %c0_i32_1 = arith.constant 0 : i32
    return %c0_i32, %c0_i32_0 : i32, i32
  }
  func.func @transform_5(%arg0: i32) -> (i32, i32) {
    %c0_i32 = arith.constant 0 : i32
    %c0_i32_0 = arith.constant 0 : i32
    return %arg0, %c0_i32 : i32, i32
  }
}

</mosaic_0001>

<llo_original>
// kernel: tpu_custom_call.1
$region0: #{tpu_custom_call.1}
  #allocation0 [shape = 'u32[]', space=smem, size = 0x4, offset = 0x4, fixed_abs, tag = 'smem constant byte address 0x4 - core index']
  #allocation1 [shape = 'u32[144,128]{1,0:T(1,128)}', space=vmem, size = 0x12000, scoped, tag = 'internal scratch']
  %s0 = inlined_call_operand.hbm [shape: f32[8,16], index: 0, kind: input, shape index: {}]
  %s1 = inlined_call_operand.hbm [shape: f32[16,128], index: 1, kind: input, shape index: {}]
  %s2 = inlined_call_operand.vmem [shape: f32[1,128], index: 2, kind: input, shape index: {}]
  %s3 = inlined_call_operand.hbm [shape: f32[128,128], index: 3, kind: input, shape index: {}]
  %s4 = inlined_call_operand.vmem [shape: f32[1,128], index: 4, kind: input, shape index: {}]
  %s5 = inlined_call_operand.hbm [shape: f32[8,128], index: 5, kind: output, shape index: {}]
  %s6 = sld [smem:[#allocation0]]
  $region42: #{tpu_custom_call.1} parent=0
    _
  %s8 = ssub.s32 1, %s6
  %s9 = scalar_select 0, %s8, %s6
  $region1: #{tpu_custom_call.1} parent=0
    #allocation2 [shape = 'u8[4096]{0}', space=vmem, size = 0x1000, scoped, tag = 'input window, operand 0, single buffered']
    #allocation3 [shape = 's32[1]{0}', space=sflag, size = 0x4, scoped, tag = 'scoped memory for tpu_custom_call.1']
    #allocation4 [shape = 's32[1]{0}', space=sflag, size = 0x4, scoped, tag = 'scoped memory for tpu_custom_call.1']
    #allocation5 [shape = 'u8[8192]{0}', space=vmem, size = 0x2000, scoped, tag = 'input window, operand 1, single buffered']
    #allocation6 [shape = 's32[1]{0}', space=sflag, size = 0x4, scoped, tag = 'scoped memory for tpu_custom_call.1']
    #allocation7 [shape = 'u8[65536]{0}', space=vmem, size = 0x10000, scoped, tag = 'input window, operand 3, single buffered']
    #allocation8 [shape = 'u8[4096]{0}', space=vmem, size = 0x1000, scoped, tag = 'output window, operand 0, single buffered']
    %10 = vsyncpa [#allocation3], 0
    %11 = vsyncpa [#allocation6], 0
    %12 = vsyncpa [#allocation4], 0
    // Predicated region
    $region2: #{tpu_custom_call.1} parent=1 // pred_check
      _
    $region3: #{tpu_custom_call.1} parent=1 // pred_check_branch
      %14 = sbr.rel (0) target = $region5
    $region4: #{tpu_custom_call.1} parent=1 // pred_region
      %s16 = ssub.s32 128, 128
      %17 = vsyncadd [#allocation3], %s16
      %s19 = sshll.u32 [#allocation2], 4
      %s20 = int_to_ptr.vmem [resolvable:$true] %s19
      %22 = dma.hbm_to_vmem [thread:$0]  %s0, 128, %s20, [#allocation3]
    $region5: #{tpu_custom_call.1} parent=1 // pred_fallthru
      _
    // Predicated region
    $region6: #{tpu_custom_call.1} parent=1 // pred_check
      _
    $region7: #{tpu_custom_call.1} parent=1 // pred_check_branch
      %24 = sbr.rel (0) target = $region9
    $region8: #{tpu_custom_call.1} parent=1 // pred_region
      %s26 = ssub.s32 256, 256
      %27 = vsyncadd [#allocation6], %s26
      %s28 = sshll.u32 [#allocation5], 4
      %s29 = int_to_ptr.vmem [resolvable:$true] %s28
      %34 = dma.hbm_to_vmem [thread:$0]  %s1, 256, %s29, [#allocation6], 128, 128, 8
    $region9: #{tpu_custom_call.1} parent=1 // pred_fallthru
      _
    // Predicated region
    $region10: #{tpu_custom_call.1} parent=1 // pred_check
      _
    $region11: #{tpu_custom_call.1} parent=1 // pred_check_branch
      %36 = sbr.rel (0) target = $region13
    $region12: #{tpu_custom_call.1} parent=1 // pred_region
      _
    $region13: #{tpu_custom_call.1} parent=1 // pred_fallthru
      _
    // Predicated region
    $region14: #{tpu_custom_call.1} parent=1 // pred_check
      _
    $region15: #{tpu_custom_call.1} parent=1 // pred_check_branch
      %38 = sbr.rel (0) target = $region17
    $region16: #{tpu_custom_call.1} parent=1 // pred_region
      %s40 = ssub.s32 2048, 2048
      %41 = vsyncadd [#allocation6], %s40
      %s42 = sshll.u32 [#allocation7], 4
      %s43 = int_to_ptr.vmem [resolvable:$true] %s42
      %48 = dma.hbm_to_vmem [thread:$0]  %s3, 2048, %s43, [#allocation6], 128, 128, 8
    $region17: #{tpu_custom_call.1} parent=1 // pred_fallthru
      _
    // Predicated region
    $region18: #{tpu_custom_call.1} parent=1 // pred_check
      _
    $region19: #{tpu_custom_call.1} parent=1 // pred_check_branch
      %50 = sbr.rel (0) target = $region21
    $region20: #{tpu_custom_call.1} parent=1 // pred_region
      _
    $region21: #{tpu_custom_call.1} parent=1 // pred_fallthru
      _
    // Predicated region
    $region22: #{tpu_custom_call.1} parent=1 // pred_check
      _
    $region23: #{tpu_custom_call.1} parent=1 // pred_check_branch
      %52 = sbr.rel (0) target = $region25
    $region24: #{tpu_custom_call.1} parent=1 // pred_region
      %53 = dma.done [#allocation3], 128
    $region25: #{tpu_custom_call.1} parent=1 // pred_fallthru
      _
    // Predicated region
    $region26: #{tpu_custom_call.1} parent=1 // pred_check
      _
    $region27: #{tpu_custom_call.1} parent=1 // pred_check_branch
      %55 = sbr.rel (0) target = $region29
    $region28: #{tpu_custom_call.1} parent=1 // pred_region
      %56 = dma.done [#allocation6], 256
    $region29: #{tpu_custom_call.1} parent=1 // pred_fallthru
      _
    // Predicated region
    $region30: #{tpu_custom_call.1} parent=1 // pred_check
      _
    $region31: #{tpu_custom_call.1} parent=1 // pred_check_branch
      %58 = sbr.rel (0) target = $region33
    $region32: #{tpu_custom_call.1} parent=1 // pred_region
      %59 = dma.done [#allocation6], 2048
    $region33: #{tpu_custom_call.1} parent=1 // pred_fallthru
      _
    %v60 = vld [vmem:[#allocation2] sm:$0xff]
    %v61 = vld [vmem:[#allocation5] sm:$0xff]
    %v62 = vld [vmem:[#allocation5 + $0x8] sm:$0xff]
    %v63 = vld [vmem:[%s2] sm:$0x1]
    %v65 = vlaneseq
    %v66 = vshrl.u32 %v65, 7
    %v67 = vsub.s32 0, %v66
    %v68 = vrot.slane %v63, %v67
    %vm70 = vcmask 130048
    %v72 = vsel %vm70, %v60, 0
    %74 = vmatprep.subr.mxu0 0.0
    %75 = vmatpush1.msra.mxu0 %v61
    %76 = vmatprep.subr.mxu0 0.0
    %77 = vmatpush1.msra.mxu0 %v62
    %78 = vmatprep.subr.mxu0 0.0
    %79 = vmatpush1.msra.mxu0 0.0
    %80 = vmatprep.subr.mxu0 0.0
    %81 = vmatpush1.msra.mxu0 0.0
    %82 = vmatprep.subr.mxu0 0.0
    %83 = vmatpush1.msra.mxu0 0.0
    %84 = vmatprep.subr.mxu0 0.0
    %85 = vmatpush1.msra.mxu0 0.0
    %86 = vmatprep.subr.mxu0 0.0
    %87 = vmatpush1.msra.mxu0 0.0
    %88 = vmatprep.subr.mxu0 0.0
    %89 = vmatpush1.msra.mxu0 0.0
    %90 = vmatprep.subr.mxu0 0.0
    %91 = vmatpush1.msra.mxu0 0.0
    %92 = vmatprep.subr.mxu0 0.0
    %93 = vmatpush1.msra.mxu0 0.0
    %94 = vmatprep.subr.mxu0 0.0
    %95 = vmatpush1.msra.mxu0 0.0
    %96 = vmatprep.subr.mxu0 0.0
    %97 = vmatpush1.msra.mxu0 0.0
    %98 = vmatprep.subr.mxu0 0.0
    %99 = vmatpush1.msra.mxu0 0.0
    %100 = vmatprep.subr.mxu0 0.0
    %101 = vmatpush1.msra.mxu0 0.0
    %102 = vmatprep.subr.mxu0 0.0
    %103 = vmatpush1.msra.mxu0 0.0
    %104 = vmatprep.subr.mxu0 0.0
    %105 = vmatpush1.msra.mxu0 0.0
    %106 = vmatprep.subr.mxu0 0.0
    %107 = vmatpush1.msra.mxu0 0.0
    %108 = vmatprep.subr.mxu0 0.0
    %109 = vmatpush1.msra.mxu0 0.0
    %110 = vmatprep.subr.mxu0 0.0
    %111 = vmatpush1.msra.mxu0 0.0
    %112 = vmatprep.subr.mxu0 0.0
    %113 = vmatpush1.msra.mxu0 0.0
    %114 = vmatprep.subr.mxu0 0.0
    %115 = vmatpush1.msra.mxu0 0.0
    %116 = vmatprep.subr.mxu0 0.0
    %117 = vmatpush1.msra.mxu0 0.0
    %118 = vmatprep.subr.mxu0 0.0
    %119 = vmatpush1.msra.mxu0 0.0
    %120 = vmatprep.subr.mxu0 0.0
    %121 = vmatpush1.msra.mxu0 0.0
    %122 = vmatprep.subr.mxu0 0.0
    %123 = vmatpush1.msra.mxu0 0.0
    %124 = vmatprep.subr.mxu0 0.0
    %125 = vmatpush1.msra.mxu0 0.0
    %126 = vmatprep.subr.mxu0 0.0
    %127 = vmatpush1.msra.mxu0 0.0
    %128 = vmatprep.subr.mxu0 0.0
    %129 = vmatpush1.msra.mxu0 0.0
    %130 = vmatprep.subr.mxu0 0.0
    %131 = vmatpush1.msra.mxu0 0.0
    %132 = vmatprep.subr.mxu0 0.0
    %133 = vmatpush1.msra.mxu0 0.0
    %134 = vmatprep.subr.mxu0 0.0
    %135 = vmatpush1.msra.mxu0 0.0
    %136 = vmatprep.subr.mxu0 0.0
    %137 = vmatpush1.msra.mxu0 0.0
    %138 = vmatprep.mubr.f32.mxu0 0.0
    %139 = vmatmul.mubr.f32.gmra.mrb[0].mxu0 %v72
    %v140 = vpop.f32.mrb[0].mxu0
    %v141 = vadd.f32 %v68, %v140
    %v142 = vpop.f32.mrb[0].mxu0
    %143 = vdwg.mxu0
    %v144 = vmul.f32 %v141, 0.1
    %v145 = vmax.f32 %v141, %v144
    %v146 = vld [vmem:[#allocation7] sm:$0xff]
    %v147 = vld [vmem:[#allocation7 + $0x8] sm:$0xff]
    %v148 = vld [vmem:[#allocation7 + $0x10] sm:$0xff]
    %v149 = vld [vmem:[#allocation7 + $0x18] sm:$0xff]
    %v150 = vld [vmem:[#allocation7 + $0x20] sm:$0xff]
    %v151 = vld [vmem:[#allocation7 + $0x28] sm:$0xff]
    %v152 = vld [vmem:[#allocation7 + $0x30] sm:$0xff]
    %v153 = vld [vmem:[#allocation7 + $0x38] sm:$0xff]
    %v154 = vld [vmem:[#allocation7 + $0x40] sm:$0xff]
    %v155 = vld [vmem:[#allocation7 + $0x48] sm:$0xff]
    %v156 = vld [vmem:[#allocation7 + $0x50] sm:$0xff]
    %v157 = vld [vmem:[#allocation7 + $0x58] sm:$0xff]
    %v158 = vld [vmem:[#allocation7 + $0x60] sm:$0xff]
    %v159 = vld [vmem:[#allocation7 + $0x68] sm:$0xff]
    %v160 = vld [vmem:[#allocation7 + $0x70] sm:$0xff]
    %v161 = vld [vmem:[#allocation7 + $0x78] sm:$0xff]
    %v162 = vld [vmem:[%s4] sm:$0x1]
    %v164 = vlaneseq
    %v165 = vshrl.u32 %v164, 7
    %v166 = vsub.s32 0, %v165
    %v167 = vrot.slane %v162, %v166
    %169 = vmatprep.subr.mxu0 0.0
    %170 = vmatpush1.msra.mxu0 %v146
    %171 = vmatprep.subr.mxu0 0.0
    %172 = vmatpush1.msra.mxu0 %v147
    %173 = vmatprep.subr.mxu0 0.0
    %174 = vmatpush1.msra.mxu0 %v148
    %175 = vmatprep.subr.mxu0 0.0
    %176 = vmatpush1.msra.mxu0 %v149
    %177 = vmatprep.subr.mxu0 0.0
    %178 = vmatpush1.msra.mxu0 %v150
    %179 = vmatprep.subr.mxu0 0.0
    %180 = vmatpush1.msra.mxu0 %v151
    %181 = vmatprep.subr.mxu0 0.0
    %182 = vmatpush1.msra.mxu0 %v152
    %183 = vmatprep.subr.mxu0 0.0
    %184 = vmatpush1.msra.mxu0 %v153
    %185 = vmatprep.subr.mxu0 0.0
    %186 = vmatpush1.msra.mxu0 %v154
    %187 = vmatprep.subr.mxu0 0.0
    %188 = vmatpush1.msra.mxu0 %v155
    %189 = vmatprep.subr.mxu0 0.0
    %190 = vmatpush1.msra.mxu0 %v156
    %191 = vmatprep.subr.mxu0 0.0
    %192 = vmatpush1.msra.mxu0 %v157
    %193 = vmatprep.subr.mxu0 0.0
    %194 = vmatpush1.msra.mxu0 %v158
    %195 = vmatprep.subr.mxu0 0.0
    %196 = vmatpush1.msra.mxu0 %v159
    %197 = vmatprep.subr.mxu0 0.0
    %198 = vmatpush1.msra.mxu0 %v160
    %199 = vmatprep.subr.mxu0 0.0
    %200 = vmatpush1.msra.mxu0 %v161
    %201 = vmatprep.subr.mxu0 0.0
    %202 = vmatpush1.msra.mxu0 0.0
    %203 = vmatprep.subr.mxu0 0.0
    %204 = vmatpush1.msra.mxu0 0.0
    %205 = vmatprep.subr.mxu0 0.0
    %206 = vmatpush1.msra.mxu0 0.0
    %207 = vmatprep.subr.mxu0 0.0
    %208 = vmatpush1.msra.mxu0 0.0
    %209 = vmatprep.subr.mxu0 0.0
    %210 = vmatpush1.msra.mxu0 0.0
    %211 = vmatprep.subr.mxu0 0.0
    %212 = vmatpush1.msra.mxu0 0.0
    %213 = vmatprep.subr.mxu0 0.0
    %214 = vmatpush1.msra.mxu0 0.0
    %215 = vmatprep.subr.mxu0 0.0
    %216 = vmatpush1.msra.mxu0 0.0
    %217 = vmatprep.subr.mxu0 0.0
    %218 = vmatpush1.msra.mxu0 0.0
    %219 = vmatprep.subr.mxu0 0.0
    %220 = vmatpush1.msra.mxu0 0.0
    %221 = vmatprep.subr.mxu0 0.0
    %222 = vmatpush1.msra.mxu0 0.0
    %223 = vmatprep.subr.mxu0 0.0
    %224 = vmatpush1.msra.mxu0 0.0
    %225 = vmatprep.subr.mxu0 0.0
    %226 = vmatpush1.msra.mxu0 0.0
    %227 = vmatprep.subr.mxu0 0.0
    %228 = vmatpush1.msra.mxu0 0.0
    %229 = vmatprep.subr.mxu0 0.0
    %230 = vmatpush1.msra.mxu0 0.0
    %231 = vmatprep.subr.mxu0 0.0
    %232 = vmatpush1.msra.mxu0 0.0
    %233 = vmatprep.mubr.f32.mxu0 0.0
    %234 = vmatmul.mubr.f32.gmra.mrb[0].mxu0 %v145
    %v235 = vpop.f32.mrb[0].mxu0
    %v236 = vadd.f32 %v167, %v235
    %v237 = vpop.f32.mrb[0].mxu0
    %238 = vdwg.mxu0
    %239 = vst [vmem:[#allocation8] sm:$0xff] %v236
    // Predicated region
    $region34: #{tpu_custom_call.1} parent=1 // pred_check
      _
    $region35: #{tpu_custom_call.1} parent=1 // pred_check_branch
      %241 = sbr.rel (0) target = $region37
    $region36: #{tpu_custom_call.1} parent=1 // pred_region
      %s243 = ssub.s32 128, 128
      %244 = vsyncadd [#allocation4], %s243
      %s246 = sshll.u32 [#allocation8], 4
      %s247 = int_to_ptr.vmem [resolvable:$true] %s246
      %249 = dma.vmem_to_hbm [thread:$0]  %s247, 128, %s5, [#allocation4]
    $region37: #{tpu_custom_call.1} parent=1 // pred_fallthru
      _
    // Predicated region
    $region38: #{tpu_custom_call.1} parent=1 // pred_check
      _
    $region39: #{tpu_custom_call.1} parent=1 // pred_check_branch
      %251 = sbr.rel (0) target = $region41
    $region40: #{tpu_custom_call.1} parent=1 // pred_region
      %252 = dma.done [#allocation4], 128
    $region41: #{tpu_custom_call.1} parent=1 // pred_fallthru
      _
    %253 = vsyncpa [#allocation3], 1
    %254 = vsyncpa [#allocation6], 1
    %255 = vsyncpa [#allocation4], 1

</llo_original>
